<compile_context>
chip_gen: v7x
topology: tpu7x:2x2x1
jax: 0.10.0
libtpu: 0.0.40
codegen_flags: <defaults>
</compile_context>

<pallas_src>
import functools

import jax
import jax.numpy as jnp
from jax.experimental import pallas as pl
from jax.experimental.pallas import tpu as pltpu


def _make_xtoy_kernel(n_total: int, dx: int, split_dot: bool):
    def kernel(x_ref, wt_ref, b_ref, o_ref, sum_ref, min_ref, max_ref, sq_ref):
        k = pl.program_id(1)
        nk = pl.num_programs(1)

        x = x_ref[...]                              # (bs_tile, n_tile, dx)
        xf = x.astype(jnp.float32)

        # Per-tile partial reductions over the node (sublane-adjacent) axis.
        tile_sum = jnp.sum(xf, axis=1)              # (bs_tile, dx) f32
        tile_sq = jnp.sum(xf * xf, axis=1)          # (bs_tile, dx) f32
        tile_min = jnp.min(x, axis=1).astype(jnp.float32)
        tile_max = jnp.max(x, axis=1).astype(jnp.float32)

        @pl.when(k == 0)
        def _init():
            sum_ref[...] = tile_sum
            sq_ref[...] = tile_sq
            min_ref[...] = tile_min
            max_ref[...] = tile_max

        @pl.when(k > 0)
        def _accumulate():
            sum_ref[...] += tile_sum
            sq_ref[...] += tile_sq
            min_ref[...] = jnp.minimum(min_ref[...], tile_min)
            max_ref[...] = jnp.maximum(max_ref[...], tile_max)

        @pl.when(k == nk - 1)
        def _finalize():
            n_f = jnp.float32(n_total)
            total = sum_ref[...]
            mean = total / n_f
            # Unbiased variance (PyTorch default correction=1).
            var = (sq_ref[...] - total * mean) / jnp.float32(n_total - 1)
            var = jnp.maximum(var, 0.0)             # guard tiny negative f32 error
            std = jnp.sqrt(var)

            bias = b_ref[...].astype(jnp.float32)   # (1, dy_pad)

            if split_dot:
                # dx lane-aligned: four dots with free static slices of Wt,
                # no lane-shuffling concat needed.
                out = bias + jnp.dot(mean, wt_ref[0:dx, :],
                                     preferred_element_type=jnp.float32)
                out = out + jnp.dot(min_ref[...], wt_ref[dx:2 * dx, :],
                                    preferred_element_type=jnp.float32)
                out = out + jnp.dot(max_ref[...], wt_ref[2 * dx:3 * dx, :],
                                    preferred_element_type=jnp.float32)
                out = out + jnp.dot(std, wt_ref[3 * dx:4 * dx, :],
                                    preferred_element_type=jnp.float32)
            else:
                z = jnp.concatenate([mean, min_ref[...], max_ref[...], std],
                                    axis=-1)        # (bs_tile, 4*dx)
                out = bias + jnp.dot(z, wt_ref[...],
                                     preferred_element_type=jnp.float32)

            o_ref[...] = out.astype(o_ref.dtype)

    return kernel


def _pick_bs_tile(bs: int) -> int:
    if bs <= 8 or bs % 8 != 0:
        return bs
    bt = min(64, (bs // 8) * 8)
    while bt >= 8:
        if bs % bt == 0:
            return bt
        bt -= 8
    return bs


def _pick_n_tile(n: int, bs_tile: int, dx: int, itemsize: int,
                 target_bytes: int = 4 * 1024 * 1024) -> int:
    if n * bs_tile * dx * itemsize <= target_bytes:
        return n
    max_nt = max(8, (target_bytes // max(1, bs_tile * dx * itemsize)) // 8 * 8)
    nt = min(max_nt, (n // 8) * 8)
    while nt >= 8:
        if n % nt == 0:
            return nt
        nt -= 8
    return n  # fallback: one block (correct, just not tiled)


def xtoy_forward(x, weight, bias):
    """x: (bs, n, dx); weight: (dy, 4*dx); bias: (dy,) -> (bs, dy)."""
    bs, n, dx = x.shape
    dy = weight.shape[0]

    # Lane-dense output: pad dy up to a multiple of 128 (zero columns).
    dy_pad = ((dy + 127) // 128) * 128
    wt = weight.T                                        # (4*dx, dy)
    if dy_pad != dy:
        wt = jnp.pad(wt, ((0, 0), (0, dy_pad - dy)))
        b2 = jnp.pad(bias, (0, dy_pad - dy)).reshape(1, dy_pad)
    else:
        b2 = bias.reshape(1, dy_pad)

    bs_tile = _pick_bs_tile(bs)
    n_tile = _pick_n_tile(n, bs_tile, dx, x.dtype.itemsize)
    grid = (bs // bs_tile, n // n_tile)

    split_dot = (dx % 128 == 0)
    kernel = _make_xtoy_kernel(n, dx, split_dot)

    # Explicit scoped-VMEM budget: double-buffered X tile + resident weight /
    # bias / output / scratch, with margin.  Clamped for v7x's 64 MiB VMEM.
    itemsize = x.dtype.itemsize
    need = (2 * bs_tile * n_tile * dx * itemsize          # X double buffer
            + 2 * 4 * dx * dy_pad * 4                     # weight
            + 2 * dy_pad * 4                              # bias
            + 2 * bs_tile * dy_pad * 4                    # output
            + 4 * max(8, bs_tile) * max(128, dx) * 4)     # accumulator scratch
    vmem_limit = int(min(max(4 * need, 32 * 1024 * 1024), 48 * 1024 * 1024))

    out_padded = pl.pallas_call(
        kernel,
        out_shape=jax.ShapeDtypeStruct((bs, dy_pad), x.dtype),
        grid_spec=pltpu.PrefetchScalarGridSpec(
            num_scalar_prefetch=0,
            grid=grid,
            in_specs=[
                pl.BlockSpec((bs_tile, n_tile, dx), lambda b, k: (b, k, 0)),
                pl.BlockSpec((4 * dx, dy_pad), lambda b, k: (0, 0)),
                pl.BlockSpec((1, dy_pad), lambda b, k: (0, 0)),
            ],
            out_specs=pl.BlockSpec((bs_tile, dy_pad), lambda b, k: (b, 0)),
            scratch_shapes=[
                pltpu.VMEM((bs_tile, dx), jnp.float32),   # running sum
                pltpu.VMEM((bs_tile, dx), jnp.float32),   # running min
                pltpu.VMEM((bs_tile, dx), jnp.float32),   # running max
                pltpu.VMEM((bs_tile, dx), jnp.float32),   # running sum of squares
            ],
        ),
        compiler_params=pltpu.CompilerParams(
            dimension_semantics=("parallel", "arbitrary"),
            vmem_limit_bytes=vmem_limit,
        ),
    )(x, wt, b2)

    return out_padded[:, :dy]


def xtoy_reference(x, weight, bias):
    m = jnp.mean(x, axis=1)
    mi = jnp.min(x, axis=1)
    ma = jnp.max(x, axis=1)
    std = jnp.std(x, axis=1, ddof=1)
    z = jnp.concatenate([m, mi, ma, std], axis=-1)
    return z @ weight.T + bias


if __name__ == "__main__":
    bs, n, dx, dy = 2, 8, 32, 16
    key = jax.random.PRNGKey(0)
    kx, kw, kb = jax.random.split(key, 3)

    x = jax.random.normal(kx, (bs, n, dx), dtype=jnp.float32)
    # Deterministic Linear(4*dx, dy) params (synthetic init).
    weight = jax.random.normal(kw, (dy, 4 * dx), dtype=jnp.float32) * 0.05
    bias = jax.random.normal(kb, (dy,), dtype=jnp.float32) * 0.05

    out = xtoy_forward(x, weight, bias)
    out = jax.block_until_ready(out)

    ref = xtoy_reference(x, weight, bias)
    assert out.shape == (bs, dy)
    assert jnp.allclose(out, ref, atol=1e-4, rtol=1e-4), "mismatch vs reference"

    print("KERNEL_OK")
</pallas_src>

<mosaic_0001>
module attributes {stable_mosaic.version = 11 : i64} {
  func.func @kernel(%arg0: i32, %arg1: i32, %arg2: memref<2x8x32xf32, #tpu.memory_space<vmem>>, %arg3: memref<128x128xf32, #tpu.memory_space<vmem>>, %arg4: memref<1x128xf32, #tpu.memory_space<vmem>>, %arg5: memref<2x128xf32, #tpu.memory_space<vmem>>, %arg6: memref<2x32xf32, #tpu.memory_space<vmem>>, %arg7: memref<2x32xf32, #tpu.memory_space<vmem>>, %arg8: memref<2x32xf32, #tpu.memory_space<vmem>>, %arg9: memref<2x32xf32, #tpu.memory_space<vmem>>) attributes {dimension_semantics = [#tpu.dimension_semantics<parallel>, #tpu.dimension_semantics<arbitrary>], iteration_bounds = array<i64: 1, 1>, scalar_prefetch = 0 : i64, scratch_operands = 4 : i64, tpu.core_type = #tpu.core_type<tc>, window_params = [{transform_indices = @transform_0, window_bounds = array<i64: 2, 8, 32>}, {pipeline_mode = #tpu.pipeline_mode<synchronous>, transform_indices = @transform_1, window_bounds = array<i64: 128, 128>}, {pipeline_mode = #tpu.pipeline_mode<synchronous>, transform_indices = @transform_2, window_bounds = array<i64: 1, 128>}, {transform_indices = @transform_3, window_bounds = array<i64: 2, 128>}]} {
    %c0 = arith.constant 0 : index
    %c0_0 = arith.constant 0 : index
    %c0_1 = arith.constant 0 : index
    %0 = vector.load %arg2[%c0, %c0_0, %c0_1] : memref<2x8x32xf32, #tpu.memory_space<vmem>>, vector<2x8x32xf32>
    %cst = arith.constant dense<0.000000e+00> : vector<2x32xf32>
    %1 = vector.multi_reduction <add>, %0, %cst [1] : vector<2x8x32xf32> to vector<2x32xf32>
    %2 = arith.mulf %0, %0 : vector<2x8x32xf32>
    %cst_2 = arith.constant dense<0.000000e+00> : vector<2x32xf32>
    %3 = vector.multi_reduction <add>, %2, %cst_2 [1] : vector<2x8x32xf32> to vector<2x32xf32>
    %cst_3 = arith.constant dense<0x7F800000> : vector<2x32xf32>
    %4 = vector.multi_reduction <minimumf>, %0, %cst_3 [1] : vector<2x8x32xf32> to vector<2x32xf32>
    %cst_4 = arith.constant dense<0xFF800000> : vector<2x32xf32>
    %5 = vector.multi_reduction <maximumf>, %0, %cst_4 [1] : vector<2x8x32xf32> to vector<2x32xf32>
    %c0_i32 = arith.constant 0 : i32
    %6 = arith.cmpi eq, %arg1, %c0_i32 : i32
    %7 = arith.extui %6 : i1 to i32
    %c0_i32_5 = arith.constant 0 : i32
    %8 = arith.cmpi ne, %7, %c0_i32_5 : i32
    scf.if %8 {
      %c0_10 = arith.constant 0 : index
      %c0_11 = arith.constant 0 : index
      %15 = vector.load %arg6[%c0_10, %c0_11] : memref<2x32xf32, #tpu.memory_space<vmem>>, vector<2x32xf32>
      tpu.vector_store %arg6[%c0_10, %c0_11], %1 {strides = array<i32>} : memref<2x32xf32, #tpu.memory_space<vmem>>, vector<2x32xf32>,
      %c0_12 = arith.constant 0 : index
      %c0_13 = arith.constant 0 : index
      %16 = vector.load %arg9[%c0_12, %c0_13] : memref<2x32xf32, #tpu.memory_space<vmem>>, vector<2x32xf32>
      tpu.vector_store %arg9[%c0_12, %c0_13], %3 {strides = array<i32>} : memref<2x32xf32, #tpu.memory_space<vmem>>, vector<2x32xf32>,
      %c0_14 = arith.constant 0 : index
      %c0_15 = arith.constant 0 : index
      %17 = vector.load %arg7[%c0_14, %c0_15] : memref<2x32xf32, #tpu.memory_space<vmem>>, vector<2x32xf32>
      tpu.vector_store %arg7[%c0_14, %c0_15], %4 {strides = array<i32>} : memref<2x32xf32, #tpu.memory_space<vmem>>, vector<2x32xf32>,
      %c0_16 = arith.constant 0 : index
      %c0_17 = arith.constant 0 : index
      %18 = vector.load %arg8[%c0_16, %c0_17] : memref<2x32xf32, #tpu.memory_space<vmem>>, vector<2x32xf32>
      tpu.vector_store %arg8[%c0_16, %c0_17], %5 {strides = array<i32>} : memref<2x32xf32, #tpu.memory_space<vmem>>, vector<2x32xf32>,
    } else {
    }
    %c0_i32_6 = arith.constant 0 : i32
    %9 = arith.cmpi sgt, %arg1, %c0_i32_6 : i32
    %10 = arith.extui %9 : i1 to i32
    %c0_i32_7 = arith.constant 0 : i32
    %11 = arith.cmpi ne, %10, %c0_i32_7 : i32
    scf.if %11 {
      %c0_10 = arith.constant 0 : index
      %c0_11 = arith.constant 0 : index
      %15 = vector.load %arg6[%c0_10, %c0_11] : memref<2x32xf32, #tpu.memory_space<vmem>>, vector<2x32xf32>
      %16 = arith.addf %15, %1 : vector<2x32xf32>
      %c0_12 = arith.constant 0 : index
      %c0_13 = arith.constant 0 : index
      %17 = vector.load %arg6[%c0_12, %c0_13] : memref<2x32xf32, #tpu.memory_space<vmem>>, vector<2x32xf32>
      tpu.vector_store %arg6[%c0_12, %c0_13], %16 {strides = array<i32>} : memref<2x32xf32, #tpu.memory_space<vmem>>, vector<2x32xf32>,
      %c0_14 = arith.constant 0 : index
      %c0_15 = arith.constant 0 : index
      %18 = vector.load %arg9[%c0_14, %c0_15] : memref<2x32xf32, #tpu.memory_space<vmem>>, vector<2x32xf32>
      %19 = arith.addf %18, %3 : vector<2x32xf32>
      %c0_16 = arith.constant 0 : index
      %c0_17 = arith.constant 0 : index
      %20 = vector.load %arg9[%c0_16, %c0_17] : memref<2x32xf32, #tpu.memory_space<vmem>>, vector<2x32xf32>
      tpu.vector_store %arg9[%c0_16, %c0_17], %19 {strides = array<i32>} : memref<2x32xf32, #tpu.memory_space<vmem>>, vector<2x32xf32>,
      %c0_18 = arith.constant 0 : index
      %c0_19 = arith.constant 0 : index
      %21 = vector.load %arg7[%c0_18, %c0_19] : memref<2x32xf32, #tpu.memory_space<vmem>>, vector<2x32xf32>
      %22 = arith.minimumf %21, %4 : vector<2x32xf32>
      %c0_20 = arith.constant 0 : index
      %c0_21 = arith.constant 0 : index
      %23 = vector.load %arg7[%c0_20, %c0_21] : memref<2x32xf32, #tpu.memory_space<vmem>>, vector<2x32xf32>
      tpu.vector_store %arg7[%c0_20, %c0_21], %22 {strides = array<i32>} : memref<2x32xf32, #tpu.memory_space<vmem>>, vector<2x32xf32>,
      %c0_22 = arith.constant 0 : index
      %c0_23 = arith.constant 0 : index
      %24 = vector.load %arg8[%c0_22, %c0_23] : memref<2x32xf32, #tpu.memory_space<vmem>>, vector<2x32xf32>
      %25 = arith.maximumf %24, %5 : vector<2x32xf32>
      %c0_24 = arith.constant 0 : index
      %c0_25 = arith.constant 0 : index
      %26 = vector.load %arg8[%c0_24, %c0_25] : memref<2x32xf32, #tpu.memory_space<vmem>>, vector<2x32xf32>
      tpu.vector_store %arg8[%c0_24, %c0_25], %25 {strides = array<i32>} : memref<2x32xf32, #tpu.memory_space<vmem>>, vector<2x32xf32>,
    } else {
    }
    %c0_i32_8 = arith.constant 0 : i32
    %12 = arith.cmpi eq, %arg1, %c0_i32_8 : i32
    %13 = arith.extui %12 : i1 to i32
    %c0_i32_9 = arith.constant 0 : i32
    %14 = arith.cmpi ne, %13, %c0_i32_9 : i32
    scf.if %14 {
      %c0_10 = arith.constant 0 : index
      %c0_11 = arith.constant 0 : index
      %15 = vector.load %arg6[%c0_10, %c0_11] : memref<2x32xf32, #tpu.memory_space<vmem>>, vector<2x32xf32>
      %cst_12 = arith.constant 8.000000e+00 : f32
      %16 = vector.broadcast %cst_12 : f32 to vector<2x32xf32>
      %17 = arith.divf %15, %16 : vector<2x32xf32>
      %c0_13 = arith.constant 0 : index
      %c0_14 = arith.constant 0 : index
      %18 = vector.load %arg9[%c0_13, %c0_14] : memref<2x32xf32, #tpu.memory_space<vmem>>, vector<2x32xf32>
      %19 = arith.mulf %15, %17 : vector<2x32xf32>
      %20 = arith.subf %18, %19 : vector<2x32xf32>
      %cst_15 = arith.constant 7.000000e+00 : f32
      %21 = vector.broadcast %cst_15 : f32 to vector<2x32xf32>
      %22 = arith.divf %20, %21 : vector<2x32xf32>
      %cst_16 = arith.constant 0.000000e+00 : f32
      %23 = vector.broadcast %cst_16 : f32 to vector<2x32xf32>
      %24 = arith.maximumf %22, %23 : vector<2x32xf32>
      %25 = math.sqrt %24 : vector<2x32xf32>
      %c0_17 = arith.constant 0 : index
      %c0_18 = arith.constant 0 : index
      %26 = vector.load %arg4[%c0_17, %c0_18] : memref<1x128xf32, #tpu.memory_space<vmem>>, vector<1x128xf32>
      %c0_19 = arith.constant 0 : index
      %c0_20 = arith.constant 0 : index
      %27 = vector.load %arg7[%c0_19, %c0_20] : memref<2x32xf32, #tpu.memory_space<vmem>>, vector<2x32xf32>
      %c0_21 = arith.constant 0 : index
      %c0_22 = arith.constant 0 : index
      %28 = vector.load %arg8[%c0_21, %c0_22] : memref<2x32xf32, #tpu.memory_space<vmem>>, vector<2x32xf32>
      %29 = tpu.concatenate %17, %27, %28, %25 in 1 : vector<2x32xf32>, vector<2x32xf32>, vector<2x32xf32>, vector<2x32xf32> -> vector<2x128xf32>
      %c0_23 = arith.constant 0 : index
      %c0_24 = arith.constant 0 : index
      %30 = vector.load %arg3[%c0_23, %c0_24] : memref<128x128xf32, #tpu.memory_space<vmem>>, vector<128x128xf32>
      %cst_25 = arith.constant dense<0.000000e+00> : vector<2x128xf32>
      %31 = tpu.matmul %29, %30, %cst_25 {dimension_numbers = #tpu.dot_dimension_numbers<[1], [0], [0], [1], [0, 0, 1, 1], [], []>} : vector<2x128xf32>, vector<128x128xf32>, vector<2x128xf32> -> vector<2x128xf32>
      %32 = vector.broadcast %26 : vector<1x128xf32> to vector<2x128xf32>
      %33 = arith.addf %32, %31 : vector<2x128xf32>
      %c0_26 = arith.constant 0 : index
      %c0_27 = arith.constant 0 : index
      %34 = vector.load %arg5[%c0_26, %c0_27] : memref<2x128xf32, #tpu.memory_space<vmem>>, vector<2x128xf32>
      tpu.vector_store %arg5[%c0_26, %c0_27], %33 {strides = array<i32>} : memref<2x128xf32, #tpu.memory_space<vmem>>, vector<2x128xf32>,
    } else {
    }
    return
  }
  func.func @transform_0(%arg0: i32, %arg1: i32) -> (i32, i32, i32) {
    %c0_i32 = arith.constant 0 : i32
    %c0_i32_0 = arith.constant 0 : i32
    return %arg0, %arg1, %c0_i32 : i32, i32, i32
  }
  func.func @transform_1(%arg0: i32, %arg1: i32) -> (i32, i32) {
    %c0_i32 = arith.constant 0 : i32
    %c0_i32_0 = arith.constant 0 : i32
    %c0_i32_1 = arith.constant 0 : i32
    return %c0_i32, %c0_i32_0 : i32, i32
  }
  func.func @transform_2(%arg0: i32, %arg1: i32) -> (i32, i32) {
    %c0_i32 = arith.constant 0 : i32
    %c0_i32_0 = arith.constant 0 : i32
    %c0_i32_1 = arith.constant 0 : i32
    return %c0_i32, %c0_i32_0 : i32, i32
  }
  func.func @transform_3(%arg0: i32, %arg1: i32) -> (i32, i32) {
    %c0_i32 = arith.constant 0 : i32
    %c0_i32_0 = arith.constant 0 : i32
    return %arg0, %c0_i32 : i32, i32
  }
}

</mosaic_0001>

<llo_original>
// kernel: tpu_custom_call.1
$region0: #{tpu_custom_call.1}
  #allocation0 [shape = 'u32[]', space=smem, size = 0x4, offset = 0x4, fixed_abs, tag = 'smem constant byte address 0x4 - core index']
  #allocation1 [shape = 'u32[144,128]{1,0:T(1,128)}', space=vmem, size = 0x12000, scoped, tag = 'internal scratch']
  #allocation2 [shape = 'f32[2,32]{1,0:T(2,128)}', space=vmem, size = 0x400, scoped, tag = 'scratch operand']
  #allocation3 [shape = 'f32[2,32]{1,0:T(2,128)}', space=vmem, size = 0x400, scoped, tag = 'scratch operand']
  #allocation4 [shape = 'f32[2,32]{1,0:T(2,128)}', space=vmem, size = 0x400, scoped, tag = 'scratch operand']
  #allocation5 [shape = 'f32[2,32]{1,0:T(2,128)}', space=vmem, size = 0x400, scoped, tag = 'scratch operand']
  %s0 = inlined_call_operand.hbm [shape: f32[2,8,32], index: 0, kind: input, shape index: {}]
  %s1 = inlined_call_operand.hbm [shape: f32[128,128], index: 1, kind: input, shape index: {}]
  %s2 = inlined_call_operand.vmem [shape: f32[1,128], index: 2, kind: input, shape index: {}]
  %s3 = inlined_call_operand.hbm [shape: f32[2,128], index: 3, kind: output, shape index: {}]
  %s4 = sld [smem:[#allocation0]]
  $region42: #{tpu_custom_call.1} parent=0
    _
  %s6 = ssub.s32 1, %s4
  %s7 = scalar_select 0, %s6, %s4
  $region1: #{tpu_custom_call.1} parent=0
    #allocation6 [shape = 'u8[8192]{0}', space=vmem, size = 0x2000, scoped, tag = 'input window, operand 0, single buffered']
    #allocation7 [shape = 's32[1]{0}', space=sflag, size = 0x4, scoped, tag = 'scoped memory for tpu_custom_call.1']
    #allocation8 [shape = 's32[1]{0}', space=sflag, size = 0x4, scoped, tag = 'scoped memory for tpu_custom_call.1']
    #allocation9 [shape = 'u8[65536]{0}', space=vmem, size = 0x10000, scoped, tag = 'input window, operand 1, single buffered']
    #allocation10 [shape = 's32[1]{0}', space=sflag, size = 0x4, scoped, tag = 'scoped memory for tpu_custom_call.1']
    #allocation11 [shape = 'u8[1024]{0}', space=vmem, size = 0x400, scoped, tag = 'output window, operand 0, single buffered']
    %8 = vsyncpa [#allocation7], 0
    %9 = vsyncpa [#allocation10], 0
    %10 = vsyncpa [#allocation8], 0
    // Predicated region
    $region2: #{tpu_custom_call.1} parent=1 // pred_check
      _
    $region3: #{tpu_custom_call.1} parent=1 // pred_check_branch
      %12 = sbr.rel (0) target = $region5
    $region4: #{tpu_custom_call.1} parent=1 // pred_region
      %s14 = ssub.s32 256, 256
      %15 = vsyncadd [#allocation7], %s14
      %s16 = sshll.u32 [#allocation6], 4
      %s17 = int_to_ptr.vmem [resolvable:$true] %s16
      %22 = dma.hbm_to_vmem [thread:$0]  %s0, 256, %s17, [#allocation7], 128, 128, 8
    $region5: #{tpu_custom_call.1} parent=1 // pred_fallthru
      _
    // Predicated region
    $region6: #{tpu_custom_call.1} parent=1 // pred_check
      _
    $region7: #{tpu_custom_call.1} parent=1 // pred_check_branch
      %24 = sbr.rel (0) target = $region9
    $region8: #{tpu_custom_call.1} parent=1 // pred_region
      %s26 = ssub.s32 2048, 2048
      %27 = vsyncadd [#allocation10], %s26
      %s28 = sshll.u32 [#allocation9], 4
      %s29 = int_to_ptr.vmem [resolvable:$true] %s28
      %34 = dma.hbm_to_vmem [thread:$0]  %s1, 2048, %s29, [#allocation10], 128, 128, 8
    $region9: #{tpu_custom_call.1} parent=1 // pred_fallthru
      _
    // Predicated region
    $region10: #{tpu_custom_call.1} parent=1 // pred_check
      _
    $region11: #{tpu_custom_call.1} parent=1 // pred_check_branch
      %36 = sbr.rel (0) target = $region13
    $region12: #{tpu_custom_call.1} parent=1 // pred_region
      _
    $region13: #{tpu_custom_call.1} parent=1 // pred_fallthru
      _
    // Predicated region
    $region14: #{tpu_custom_call.1} parent=1 // pred_check
      _
    $region15: #{tpu_custom_call.1} parent=1 // pred_check_branch
      %38 = sbr.rel (0) target = $region17
    $region16: #{tpu_custom_call.1} parent=1 // pred_region
      %39 = dma.done [#allocation7], 256
    $region17: #{tpu_custom_call.1} parent=1 // pred_fallthru
      _
    // Predicated region
    $region18: #{tpu_custom_call.1} parent=1 // pred_check
      _
    $region19: #{tpu_custom_call.1} parent=1 // pred_check_branch
      %41 = sbr.rel (0) target = $region21
    $region20: #{tpu_custom_call.1} parent=1 // pred_region
      %42 = dma.done [#allocation10], 2048
    $region21: #{tpu_custom_call.1} parent=1 // pred_fallthru
      _
    %v43 = vld [vmem:[#allocation6] sm:$0xff]
    %v44 = vld [vmem:[#allocation6 + $0x8] sm:$0xff]
    %vm45 = vcmask 261120
    %v46 = vsel %vm45, %v43, 0.0
    %v47 = vrot.slane %v46, 4
    %v48 = vadd.f32 %v46, %v47
    %v49 = vrot.slane %v48, 2
    %v50 = vadd.f32 %v48, %v49
    %v51 = vrot.slane %v50, 1
    %v52 = vadd.f32 %v50, %v51
    %v53 = vsel %vm45, %v44, 0.0
    %v54 = vrot.slane %v53, 4
    %v55 = vadd.f32 %v53, %v54
    %v56 = vrot.slane %v55, 2
    %v57 = vadd.f32 %v55, %v56
    %v58 = vrot.slane %v57, 1
    %v59 = vadd.f32 %v57, %v58
    %v60 = vmul.f32 %v43, %v43
    %v61 = vmul.f32 %v44, %v44
    %v62 = vsel %vm45, %v60, 0.0
    %v63 = vrot.slane %v62, 4
    %v64 = vadd.f32 %v62, %v63
    %v65 = vrot.slane %v64, 2
    %v66 = vadd.f32 %v64, %v65
    %v67 = vrot.slane %v66, 1
    %v68 = vadd.f32 %v66, %v67
    %v69 = vsel %vm45, %v61, 0.0
    %v70 = vrot.slane %v69, 4
    %v71 = vadd.f32 %v69, %v70
    %v72 = vrot.slane %v71, 2
    %v73 = vadd.f32 %v71, %v72
    %v74 = vrot.slane %v73, 1
    %v75 = vadd.f32 %v73, %v74
    %v76 = vsel %vm45, %v43, inf
    %v77 = vrot.slane %v76, 4
    %v78 = vmin.f32 %v76, %v77
    %v79 = vrot.slane %v78, 2
    %v80 = vmin.f32 %v78, %v79
    %v81 = vrot.slane %v80, 1
    %v82 = vmin.f32 %v80, %v81
    %v83 = vsel %vm45, %v44, inf
    %v84 = vrot.slane %v83, 4
    %v85 = vmin.f32 %v83, %v84
    %v86 = vrot.slane %v85, 2
    %v87 = vmin.f32 %v85, %v86
    %v88 = vrot.slane %v87, 1
    %v89 = vmin.f32 %v87, %v88
    %v90 = vsel %vm45, %v43, -inf
    %v91 = vrot.slane %v90, 4
    %v92 = vmax.f32 %v90, %v91
    %v93 = vrot.slane %v92, 2
    %v94 = vmax.f32 %v92, %v93
    %v95 = vrot.slane %v94, 1
    %v96 = vmax.f32 %v94, %v95
    %v97 = vsel %vm45, %v44, -inf
    %v98 = vrot.slane %v97, 4
    %v99 = vmax.f32 %v97, %v98
    %v100 = vrot.slane %v99, 2
    %v101 = vmax.f32 %v99, %v100
    %v102 = vrot.slane %v101, 1
    %v103 = vmax.f32 %v101, %v102
    %p104 = scmp.eq.s32.totalorder 0, 0
    // Predicated region
    $region22: #{tpu_custom_call.1} parent=1 // pred_check
      %p105 = pneg %p104
    $region23: #{tpu_custom_call.1} parent=1 // pred_check_branch
      %107 = sbr.rel (%p105) target = $region25
    $region24: #{tpu_custom_call.1} parent=1 // pred_region
      %vm110 = vcmask 1041409
      %v111 = vsel %vm110, %v59, %v52
      %vm113 = vcmask 254976
      %114 = vst.msk [vmem:[#allocation2] sm:$0x3] %vm113, %v111
      %v117 = vsel %vm110, %v75, %v68
      %119 = vst.msk [vmem:[#allocation5] sm:$0x3] %vm113, %v117
      %v122 = vsel %vm110, %v89, %v82
      %124 = vst.msk [vmem:[#allocation3] sm:$0x3] %vm113, %v122
      %v127 = vsel %vm110, %v103, %v96
      %129 = vst.msk [vmem:[#allocation4] sm:$0x3] %vm113, %v127
    $region25: #{tpu_custom_call.1} parent=1 // pred_fallthru
      _
    %p130 = scmp.gt.s32.totalorder 0, 0
    // Predicated region
    $region26: #{tpu_custom_call.1} parent=1 // pred_check
      %p131 = pneg %p130
    $region27: #{tpu_custom_call.1} parent=1 // pred_check_branch
      %133 = sbr.rel (%p131) target = $region29
    $region28: #{tpu_custom_call.1} parent=1 // pred_region
      %v134 = vld [vmem:[#allocation2] sm:$0x3]
      %vm137 = vcmask 1041409
      %v138 = vsel %vm137, %v59, %v52
      %v140 = vadd.f32 %v134, %v138
      %vm141 = vcmask 254976
      %142 = vst.msk [vmem:[#allocation2] sm:$0x3] %vm141, %v140
      %v143 = vld [vmem:[#allocation5] sm:$0x3]
      %v146 = vsel %vm137, %v75, %v68
      %v148 = vadd.f32 %v143, %v146
      %149 = vst.msk [vmem:[#allocation5] sm:$0x3] %vm141, %v148
      %v150 = vld [vmem:[#allocation3] sm:$0x3]
      %v153 = vsel %vm137, %v89, %v82
      %v155 = vmin.f32 %v150, %v153
      %156 = vst.msk [vmem:[#allocation3] sm:$0x3] %vm141, %v155
      %v157 = vld [vmem:[#allocation4] sm:$0x3]
      %v160 = vsel %vm137, %v103, %v96
      %v162 = vmax.f32 %v157, %v160
      %163 = vst.msk [vmem:[#allocation4] sm:$0x3] %vm141, %v162
    $region29: #{tpu_custom_call.1} parent=1 // pred_fallthru
      _
    // Predicated region
    $region30: #{tpu_custom_call.1} parent=1 // pred_check
      %p164 = pneg %p104
    $region31: #{tpu_custom_call.1} parent=1 // pred_check_branch
      %166 = sbr.rel (%p164) target = $region33
    $region32: #{tpu_custom_call.1} parent=1 // pred_region
      %v167 = vld [vmem:[#allocation2] sm:$0x3]
      %v168 = vrcp.pop 8.0
      %v169 = vmul.f32 %v167, %v168
      %v170 = vld [vmem:[#allocation5] sm:$0x3]
      %v171 = vmul.f32 %v167, %v169
      %v172 = vsub.f32 %v170, %v171
      %v173 = vrcp.pop 7.0
      %v174 = vmul.f32 %v172, %v173
      %v175 = vmax.f32 %v174, 0.0
      %v176 = vrsqrt.pop %v175
      %v177 = vmul.f32 %v175, %v176
      %vm178 = vcmp.eq.f32.partialorder %v175, inf
      %v179 = vsel %vm178, %v175, %v177
      %vm180 = vcmp.eq.f32.partialorder %v175, 0.0
      %v181 = vand.u32 %v175, 2147483648
      %v182 = vsel %vm180, %v181, %v179
      %v183 = vld [vmem:[%s2] sm:$0x1]
      %v184 = vld [vmem:[#allocation3] sm:$0x3]
      %v185 = vld [vmem:[#allocation4] sm:$0x3]
      %187 = vrot.lane.b32.xlu0 %v184, 32
      %v188 = vpop.permute.xlu0 %187
      %191 = vrot.lane.b32.xlu0 %v185, 64
      %v192 = vpop.permute.xlu0 %191
      %195 = vrot.lane.b32.xlu0 %v182, 96
      %v196 = vpop.permute.xlu0 %195
      %v198 = vsel %vm45, %v169, %v188
      %vm199 = vcmask 523264
      %v200 = vsel %vm199, %v198, %v192
      %vm201 = vcmask 785408
      %v202 = vsel %vm201, %v200, %v196
      %v203 = vld [vmem:[#allocation9] sm:$0xff]
      %v204 = vld [vmem:[#allocation9 + $0x8] sm:$0xff]
      %v205 = vld [vmem:[#allocation9 + $0x10] sm:$0xff]
      %v206 = vld [vmem:[#allocation9 + $0x18] sm:$0xff]
      %v207 = vld [vmem:[#allocation9 + $0x20] sm:$0xff]
      %v208 = vld [vmem:[#allocation9 + $0x28] sm:$0xff]
      %v209 = vld [vmem:[#allocation9 + $0x30] sm:$0xff]
      %v210 = vld [vmem:[#allocation9 + $0x38] sm:$0xff]
      %v211 = vld [vmem:[#allocation9 + $0x40] sm:$0xff]
      %v212 = vld [vmem:[#allocation9 + $0x48] sm:$0xff]
      %v213 = vld [vmem:[#allocation9 + $0x50] sm:$0xff]
      %v214 = vld [vmem:[#allocation9 + $0x58] sm:$0xff]
      %v215 = vld [vmem:[#allocation9 + $0x60] sm:$0xff]
      %v216 = vld [vmem:[#allocation9 + $0x68] sm:$0xff]
      %v217 = vld [vmem:[#allocation9 + $0x70] sm:$0xff]
      %v218 = vld [vmem:[#allocation9 + $0x78] sm:$0xff]
      %219 = vmatprep.subr.mxu0 0.0
      %220 = vmatpush1.msra.mxu0 %v203
      %221 = vmatprep.subr.mxu0 0.0
      %222 = vmatpush1.msra.mxu0 %v204
      %223 = vmatprep.subr.mxu0 0.0
      %224 = vmatpush1.msra.mxu0 %v205
      %225 = vmatprep.subr.mxu0 0.0
      %226 = vmatpush1.msra.mxu0 %v206
      %227 = vmatprep.subr.mxu0 0.0
      %228 = vmatpush1.msra.mxu0 %v207
      %229 = vmatprep.subr.mxu0 0.0
      %230 = vmatpush1.msra.mxu0 %v208
      %231 = vmatprep.subr.mxu0 0.0
      %232 = vmatpush1.msra.mxu0 %v209
      %233 = vmatprep.subr.mxu0 0.0
      %234 = vmatpush1.msra.mxu0 %v210
      %235 = vmatprep.subr.mxu0 0.0
      %236 = vmatpush1.msra.mxu0 %v211
      %237 = vmatprep.subr.mxu0 0.0
      %238 = vmatpush1.msra.mxu0 %v212
      %239 = vmatprep.subr.mxu0 0.0
      %240 = vmatpush1.msra.mxu0 %v213
      %241 = vmatprep.subr.mxu0 0.0
      %242 = vmatpush1.msra.mxu0 %v214
      %243 = vmatprep.subr.mxu0 0.0
      %244 = vmatpush1.msra.mxu0 %v215
      %245 = vmatprep.subr.mxu0 0.0
      %246 = vmatpush1.msra.mxu0 %v216
      %247 = vmatprep.subr.mxu0 0.0
      %248 = vmatpush1.msra.mxu0 %v217
      %249 = vmatprep.subr.mxu0 0.0
      %250 = vmatpush1.msra.mxu0 %v218
      %251 = vmatprep.subr.mxu0 0.0
      %252 = vmatpush1.msra.mxu0 0.0
      %253 = vmatprep.subr.mxu0 0.0
      %254 = vmatpush1.msra.mxu0 0.0
      %255 = vmatprep.subr.mxu0 0.0
      %256 = vmatpush1.msra.mxu0 0.0
      %257 = vmatprep.subr.mxu0 0.0
      %258 = vmatpush1.msra.mxu0 0.0
      %259 = vmatprep.subr.mxu0 0.0
      %260 = vmatpush1.msra.mxu0 0.0
      %261 = vmatprep.subr.mxu0 0.0
      %262 = vmatpush1.msra.mxu0 0.0
      %263 = vmatprep.subr.mxu0 0.0
      %264 = vmatpush1.msra.mxu0 0.0
      %265 = vmatprep.subr.mxu0 0.0
      %266 = vmatpush1.msra.mxu0 0.0
      %267 = vmatprep.subr.mxu0 0.0
      %268 = vmatpush1.msra.mxu0 0.0
      %269 = vmatprep.subr.mxu0 0.0
      %270 = vmatpush1.msra.mxu0 0.0
      %271 = vmatprep.subr.mxu0 0.0
      %272 = vmatpush1.msra.mxu0 0.0
      %273 = vmatprep.subr.mxu0 0.0
      %274 = vmatpush1.msra.mxu0 0.0
      %275 = vmatprep.subr.mxu0 0.0
      %276 = vmatpush1.msra.mxu0 0.0
      %277 = vmatprep.subr.mxu0 0.0
      %278 = vmatpush1.msra.mxu0 0.0
      %279 = vmatprep.subr.mxu0 0.0
      %280 = vmatpush1.msra.mxu0 0.0
      %281 = vmatprep.subr.mxu0 0.0
      %282 = vmatpush1.msra.mxu0 0.0
      %283 = vmatprep.mubr.f32.mxu0 0.0
      %284 = vmatmul.mubr.f32.gmra.mrb[0].mxu0 %v202
      %v285 = vpop.f32.mrb[0].mxu0
      %v286 = vadd.f32 0.0, %v285
      %v287 = vpop.f32.mrb[0].mxu0
      %288 = vdwg.mxu0
      %v290 = vlaneseq
      %v291 = vshrl.u32 %v290, 7
      %v292 = vsub.s32 0, %v291
      %v293 = vrot.slane %v183, %v292
      %v295 = vadd.f32 %v293, %v286
      %296 = vst [vmem:[#allocation11] sm:$0x3] %v295
    $region33: #{tpu_custom_call.1} parent=1 // pred_fallthru
      _
    // Predicated region
    $region34: #{tpu_custom_call.1} parent=1 // pred_check
      _
    $region35: #{tpu_custom_call.1} parent=1 // pred_check_branch
      %298 = sbr.rel (0) target = $region37
    $region36: #{tpu_custom_call.1} parent=1 // pred_region
      %s300 = ssub.s32 32, 32
      %301 = vsyncadd [#allocation8], %s300
      %s303 = sshll.u32 [#allocation11], 4
      %s304 = int_to_ptr.vmem [resolvable:$true] %s303
      %306 = dma.vmem_to_hbm [thread:$0]  %s304, 32, %s3, [#allocation8]
    $region37: #{tpu_custom_call.1} parent=1 // pred_fallthru
      _
    // Predicated region
    $region38: #{tpu_custom_call.1} parent=1 // pred_check
      _
    $region39: #{tpu_custom_call.1} parent=1 // pred_check_branch
      %308 = sbr.rel (0) target = $region41
    $region40: #{tpu_custom_call.1} parent=1 // pred_region
      %309 = dma.done [#allocation8], 32
    $region41: #{tpu_custom_call.1} parent=1 // pred_fallthru
      _
    %310 = vsyncpa [#allocation7], 1
    %311 = vsyncpa [#allocation10], 1
    %312 = vsyncpa [#allocation8], 1

</llo_original>
